<compile_context>
chip_gen: v5e
topology: v5e:2x2
jax: 0.10.0
libtpu: 0.0.40
codegen_flags: <defaults>
</compile_context>

<pallas_src>
import functools

import numpy as np
import jax
import jax.numpy as jnp
from jax.experimental import pallas as pl
from jax.experimental.pallas import tpu as pltpu


# ----------------------------------------------------------------------------
# helpers
# ----------------------------------------------------------------------------
def _mosaic_params(semantics, vmem_bytes):
    """CompilerParams with a scoped-VMEM budget safe on v5e/v6e/v7x (<=56 MiB)."""
    limit = int(min(max(int(vmem_bytes) + (16 << 20), 32 << 20), 56 << 20))
    return pltpu.CompilerParams(dimension_semantics=semantics,
                                vmem_limit_bytes=limit)


def _block_vmem_estimate(bb, T, C, W, Co, k):
    """Double-buffered I/O blocks + rough in-kernel temporaries, in bytes."""
    nb = bb * T
    io = 2 * (bb * C * T * 4 + bb * k * C * T * 2 + bb * Co * T * 4)
    temps = nb * (8 * C + 30 * W + 2 * k * W + 12 * Co)
    weights = (2 * W * C + W * C + 3 * W * W + k * W * W + 2 * Co * W) * 2
    return io + temps + weights


def _choose_batch_chunk(B, T, C, W, Co, k, budget=40 << 20):
    """Largest batch chunk bb (bb | B) whose blocks+temporaries fit `budget`.

    Prefer chunks that leave >= 2 grid steps so both v7x TensorCores get work.
    Lane density: bb*T should be a multiple of 128 unless bb == B (full dim).
    """
    cands = [bb for bb in range(1, B + 1)
             if B % bb == 0 and (bb == B or (bb * T) % 128 == 0)]
    fitting = [bb for bb in cands
               if _block_vmem_estimate(bb, T, C, W, Co, k) <= budget]
    if not fitting:
        fitting = [cands[0]]
    multi = [bb for bb in fitting if B // bb >= 2]
    return max(multi) if multi else max(fitting)


def _choose_tile_t(T, C, budget=28 << 20):
    for t in (512, 256, 128):
        if T % t == 0 and T > t:
            need = 2 * (C * t * 2 + C * T * 2 + T * 4 + t * 8 * 4) + 3 * t * T * 4
            if need <= budget:
                return t
    return T


# ----------------------------------------------------------------------------
# Kernel 1: fused pairwise-similarity + top-k (kNN indices).
#   score[b, i, j] = 2 * <x_i, x_j> - ||x_j||^2
# (the row-constant -||x_i||^2 of the true -||x_i - x_j||^2 is dropped: it
#  does not change the per-row top-k ranking).  Emits (tile_t, k) int32
#  indices per grid step; the (B,T,T) score matrix never leaves VMEM.
# ----------------------------------------------------------------------------
def knn_topk_kernel(xr_ref, xc_ref, nrm_ref, idx_ref, *, num_k):
    f32 = jnp.float32
    xr = xr_ref[0]                                   # (C, tile_t) bf16
    xc = xc_ref[0]                                   # (C, T)      bf16
    s = jax.lax.dot_general(
        xr, xc, dimension_numbers=(((0,), (0,)), ((), ())),
        preferred_element_type=f32)                  # (tile_t, T)
    s = 2.0 * s - nrm_ref[0]                         # subtract ||x_j||^2

    T = s.shape[1]
    col = jax.lax.broadcasted_iota(jnp.int32, s.shape, 1)
    picks = []
    for _ in range(num_k):
        m = jnp.max(s, axis=1, keepdims=True)                       # (tile_t, 1)
        arg = jnp.min(jnp.where(s == m, col, T), axis=1,
                      keepdims=True)                                 # smallest argmax
        picks.append(arg)
        s = jnp.where(col == arg, -jnp.inf, s)                       # mask selected
    idx_ref[0] = jnp.concatenate(picks, axis=1)                      # (tile_t, k)


# ----------------------------------------------------------------------------
# Kernel 2: fused GCNeXt block (temporal branch + graph branch + residual)
# operating on a lane-dense (C, Nb) slab, Nb = bb * T, assembled in VMEM.
# ----------------------------------------------------------------------------
def gcnext_block_kernel(x_ref, xf_ref, mask_ref,
                        w1s_ref, tb1_ref, sb1_ref,
                        tw2_ref, tb2_ref, tw3_ref, tb3_ref,
                        sw1n_ref, sw2_ref, sb2_ref, sw3_ref, sb3_ref,
                        out_ref, *, num_k, pad, bb, seq_t):
    f32 = jnp.float32
    bf16 = jnp.bfloat16
    relu = lambda a: jnp.maximum(a, 0.0)

    nb = bb * seq_t
    W = tw2_ref.shape[1]
    Co = tw3_ref.shape[0]

    # ----- assemble lane-dense activation slab (C, Nb) from (bb, C, T) -----
    if bb > 1:
        x = jnp.concatenate([x_ref[b] for b in range(bb)], axis=1)   # (C, Nb) f32
    else:
        x = x_ref[0]
    x_bf = x.astype(bf16)

    mprev = mask_ref[0:1, :]               # 0 where t == 0     within a sequence
    mnext = mask_ref[1:2, :]               # 0 where t == T - 1 within a sequence

    # ----- fused first 1x1 convs: [tw1; sw1_center] @ x -> (2W, Nb) -----
    f0 = jnp.dot(w1s_ref[...], x_bf, preferred_element_type=f32)
    h1 = relu(f0[:W] + tb1_ref[...])                 # temporal branch hidden
    cent_b1 = f0[W:] + sb1_ref[...]                  # graph-branch center term

    # ---------------- temporal branch (k=3 conv via XLU roll) ----------------
    h1_prev = (pltpu.roll(h1, shift=1, axis=1) * mprev).astype(bf16)      # h1[:, t-1]
    h1_next = (pltpu.roll(h1, shift=nb - 1, axis=1) * mnext).astype(bf16)  # h1[:, t+1]
    h1_bf = h1.astype(bf16)
    tw2 = [tw2_ref[d] for d in range(3)]             # 3 x (W, W) bf16
    h2 = jnp.dot(tw2[0], h1_prev, preferred_element_type=f32)
    h2 = h2 + jnp.dot(tw2[1], h1_bf, preferred_element_type=f32)
    h2 = h2 + jnp.dot(tw2[2], h1_next, preferred_element_type=f32)
    h2 = relu(h2 + tb2_ref[...])
    tout = jnp.dot(tw3_ref[...], h2.astype(bf16), preferred_element_type=f32) \
        + tb3_ref[...]

    # ---------------- semantic (graph) branch ----------------
    sw1n = sw1n_ref[...]                              # (W, C)  bf16
    sw2 = [sw2_ref[d] for d in range(num_k)]          # k x (W, W) bf16
    sw3 = sw3_ref[...]                                # (Co, W) bf16
    sb2 = pl.broadcast_to(sb2_ref[...], (W, nb))      # hoisted broadcasts
    sb3 = pl.broadcast_to(sb3_ref[...], (Co, nb))

    s1 = []
    for j in range(num_k):
        if bb > 1:
            xfj = jnp.concatenate([xf_ref[b, j] for b in range(bb)], axis=1)
        else:
            xfj = xf_ref[0, j]                        # (C, Nb) bf16
        s1.append(relu(jnp.dot(sw1n, xfj, preferred_element_type=f32)
                       + cent_b1).astype(bf16))

    sout = None
    for j in range(num_k):                            # output neighbor position
        s2 = sb2
        for d in range(max(0, pad - j), min(num_k, num_k + pad - j)):
            s2 = s2 + jnp.dot(sw2[d], s1[j + d - pad],
                              preferred_element_type=f32)
        s2 = relu(s2)
        s3 = jnp.dot(sw3, s2.astype(bf16), preferred_element_type=f32) + sb3
        sout = s3 if sout is None else jnp.maximum(sout, s3)

    # ---------------- residual combine + ReLU, write (bb, Co, T) ----------------
    out = relu(tout + 2.0 * x + sout)                 # (Co, Nb) f32
    for b in range(bb):
        out_ref[b] = out[:, b * seq_t:(b + 1) * seq_t]


# ----------------------------------------------------------------------------
# Wrapper
# ----------------------------------------------------------------------------
def gcnext_module_forward(x, params, k):
    B, C, T = x.shape
    p = params
    W = p["tw1"].shape[0]
    Co = p["tw3"].shape[0]
    f32 = jnp.float32
    bf16 = jnp.bfloat16

    # ---- kNN: pairwise score + fused top-k (Pallas), gather stays in XLA ----
    x_bf = x.astype(bf16)
    nrm = jnp.sum(x * x, axis=1, keepdims=True)                  # (B, 1, T) f32
    tile_t = _choose_tile_t(T, C)
    knn_vmem = 2 * (C * tile_t * 2 + C * T * 2 + T * 4 + tile_t * k * 4) \
        + 4 * tile_t * T * 4
    idx = pl.pallas_call(
        functools.partial(knn_topk_kernel, num_k=k),
        out_shape=jax.ShapeDtypeStruct((B, T, k), jnp.int32),
        grid=(B, T // tile_t),
        in_specs=[pl.BlockSpec((1, C, tile_t), lambda b, j: (b, 0, j)),
                  pl.BlockSpec((1, C, T), lambda b, j: (b, 0, 0)),
                  pl.BlockSpec((1, 1, T), lambda b, j: (b, 0, 0))],
        out_specs=pl.BlockSpec((1, tile_t, k), lambda b, j: (b, j, 0)),
        compiler_params=_mosaic_params(("parallel", "parallel"), knn_vmem),
    )(x_bf, x_bf, nrm)

    # neighbor-only graph features, gathered along the lane (time) axis so the
    # result is already (B, k, C, T) bf16 -- no extra HBM transpose pass.
    # TODO(synk): fold this gather into the block kernel via scalar prefetch.
    idx_t = jnp.transpose(idx, (0, 2, 1))                        # (B, k, T)
    src = jnp.broadcast_to(x_bf[:, None, :, :], (B, k, C, T))
    gidx = jnp.broadcast_to(idx_t[:, :, None, :], (B, k, C, T))
    xf = jnp.take_along_axis(src, gidx, axis=3)                  # (B, k, C, T) bf16

    # batch-chunk selection (lane-dense slab Nb = bb*T, fits scoped VMEM,
    # prefers >= 2 grid steps so both v7x TensorCores are used when possible)
    bb = _choose_batch_chunk(B, T, C, W, Co, k)
    nb = bb * T
    nchunk = B // bb

    # sequence-boundary masks for the rolled taps (same for every chunk)
    pos = np.arange(nb)
    edge = jnp.asarray(np.stack([(pos % T != 0),
                                 (pos % T != T - 1)]).astype(np.float32))   # (2, nb)

    # weights: tw1 + sw1_center stacked (fills a 256-wide MXU at W=128), the
    # grouped convs kept as (taps, W, W) so taps become accumulating dots.
    w1s = jnp.concatenate([p["tw1"], p["sw1"][:, C:]], axis=0).astype(bf16)  # (2W, C)
    sw1n = p["sw1"][:, :C].astype(bf16)                                      # (W, C)
    tw2b = p["tw2"].astype(bf16)                                             # (3, W, W)
    sw2b = p["sw2"].astype(bf16)                                             # (k, W, W)
    tw3b = p["tw3"].astype(bf16)
    sw3b = p["sw3"].astype(bf16)

    wspec2 = lambda r, c: pl.BlockSpec((r, c), lambda i: (0, 0))
    wspec3 = lambda a, r, c: pl.BlockSpec((a, r, c), lambda i: (0, 0, 0))

    out = pl.pallas_call(
        functools.partial(gcnext_block_kernel,
                          num_k=k, pad=(k - 1) // 2, bb=bb, seq_t=T),
        out_shape=jax.ShapeDtypeStruct((B, Co, T), f32),
        grid=(nchunk,),
        in_specs=[
            pl.BlockSpec((bb, C, T), lambda i: (i, 0, 0)),        # x chunk
            pl.BlockSpec((bb, k, C, T), lambda i: (i, 0, 0, 0)),  # neighbor features
            pl.BlockSpec((2, nb), lambda i: (0, 0)),              # boundary masks
            wspec2(2 * W, C),                                     # [tw1; sw1_center]
            wspec2(W, 1), wspec2(W, 1),                           # tb1, sb1
            wspec3(3, W, W), wspec2(W, 1),                        # tw2, tb2
            wspec2(Co, W), wspec2(Co, 1),                         # tw3, tb3
            wspec2(W, C),                                         # sw1_neighbor
            wspec3(k, W, W), wspec2(W, 1),                        # sw2, sb2
            wspec2(Co, W), wspec2(Co, 1),                         # sw3, sb3
        ],
        out_specs=pl.BlockSpec((bb, Co, T), lambda i: (i, 0, 0)),
        compiler_params=_mosaic_params(
            ("parallel",), _block_vmem_estimate(bb, T, C, W, Co, k)),
    )(x, xf, edge,
      w1s, p["tb1"], p["sb1"],
      tw2b, p["tb2"], tw3b, p["tb3"],
      sw1n, sw2b, p["sb2"], sw3b, p["sb3"])

    return out, idx


# ----------------------------------------------------------------------------
# Deterministic parameter init (grouped convs stored as block-diag dense)
# ----------------------------------------------------------------------------
def init_params(key, c_in, c_out, k, groups, width_group):
    W = width_group * groups
    gs = W // groups
    mask = (np.arange(W)[:, None] // gs == np.arange(W)[None, :] // gs)
    mask = jnp.asarray(mask.astype(np.float32))
    ks = jax.random.split(key, 12)

    def n(kk, shape, scale):
        return jax.random.normal(kk, shape, dtype=jnp.float32) * scale

    return {
        "tw1": n(ks[0], (W, c_in), 1.0 / np.sqrt(c_in)),
        "tb1": n(ks[1], (W, 1), 0.1),
        "tw2": n(ks[2], (3, W, W), 1.0 / np.sqrt(3 * gs)) * mask[None],
        "tb2": n(ks[3], (W, 1), 0.1),
        "tw3": n(ks[4], (c_out, W), 1.0 / np.sqrt(W)),
        "tb3": n(ks[5], (c_out, 1), 0.1),
        "sw1": n(ks[6], (W, 2 * c_in), 1.0 / np.sqrt(2 * c_in)),
        "sb1": n(ks[7], (W, 1), 0.1),
        "sw2": n(ks[8], (k, W, W), 1.0 / np.sqrt(k * gs)) * mask[None],
        "sb2": n(ks[9], (W, 1), 0.1),
        "sw3": n(ks[10], (c_out, W), 1.0 / np.sqrt(W)),
        "sb3": n(ks[11], (c_out, 1), 0.1),
    }


# ----------------------------------------------------------------------------
# Pure-JAX f32 reference of GCNeXtBlock.forward (numerical sanity check)
# ----------------------------------------------------------------------------
def reference_forward(x, params, idx, k):
    relu = lambda a: jnp.maximum(a, 0.0)
    B, C, T = x.shape
    p = params
    b3 = lambda b: b.reshape(1, b.shape[0], 1)
    b4 = lambda b: b.reshape(1, b.shape[0], 1, 1)

    h1 = relu(jnp.einsum('oc,bct->bot', p["tw1"], x) + b3(p["tb1"]))
    h1p = jnp.pad(h1, ((0, 0), (0, 0), (1, 1)))
    h2 = sum(jnp.einsum('oc,bct->bot', p["tw2"][d], h1p[:, :, d:d + T]) for d in range(3))
    h2 = relu(h2 + b3(p["tb2"]))
    tout = jnp.einsum('oc,bct->bot', p["tw3"], h2) + b3(p["tb3"])

    xt = jnp.transpose(x, (0, 2, 1))
    feat = jax.vmap(lambda xb, ib: xb[ib])(xt, idx)
    cent = jnp.broadcast_to(xt[:, :, None, :], feat.shape)
    xf = jnp.transpose(jnp.concatenate([feat, cent], axis=-1), (0, 3, 1, 2))  # (B,2C,T,k)

    s1 = relu(jnp.einsum('oc,bctj->botj', p["sw1"], xf) + b4(p["sb1"]))
    pad = (k - 1) // 2
    s1p = jnp.pad(s1, ((0, 0), (0, 0), (0, 0), (pad, pad)))
    s2 = sum(jnp.einsum('oc,bctj->botj', p["sw2"][d], s1p[:, :, :, d:d + k]) for d in range(k))
    s2 = relu(s2 + b4(p["sb2"]))
    s3 = jnp.einsum('oc,bctj->botj', p["sw3"], s2) + b4(p["sb3"])
    sout = jnp.max(s3, axis=-1)
    return relu(tout + 2.0 * x + sout)


if __name__ == "__main__":
    # channel_in == channel_out is required by the residual add (as in PyTorch)
    B, C_IN, C_OUT, T = 2, 8, 8, 16
    K_NUM, GROUPS, WIDTH_GROUP = 3, 4, 4

    root = jax.random.PRNGKey(0)
    kp, kx = jax.random.split(root)
    params = init_params(kp, C_IN, C_OUT, K_NUM, GROUPS, WIDTH_GROUP)
    x = jax.random.normal(kx, (B, C_IN, T), dtype=jnp.float32)

    out, idx = gcnext_module_forward(x, params, K_NUM)
    out = jax.block_until_ready(out)

    assert out.shape == (B, C_OUT, T)
    # each point's nearest neighbor should be itself (self similarity is maximal)
    assert bool(jnp.all(idx[:, :, 0] == jnp.arange(T)[None, :])), "knn self-index mismatch"

    ref = reference_forward(x, params, idx, K_NUM)
    err = float(jnp.max(jnp.abs(out - ref)))
    assert np.isfinite(err) and err < 2e-1, f"mismatch vs f32 reference: max abs err {err}"

    print("KERNEL_OK")
</pallas_src>

<mosaic_0001>
module attributes {stable_mosaic.version = 11 : i64} {
  func.func @knn_topk_kernel(%arg0: i32, %arg1: i32, %arg2: memref<1x8x16xbf16, #tpu.memory_space<vmem>>, %arg3: memref<1x8x16xbf16, #tpu.memory_space<vmem>>, %arg4: memref<1x1x16xf32, #tpu.memory_space<vmem>>, %arg5: memref<1x16x3xi32, #tpu.memory_space<vmem>>) attributes {dimension_semantics = [#tpu.dimension_semantics<parallel>, #tpu.dimension_semantics<parallel>], iteration_bounds = array<i64: 2, 1>, scalar_prefetch = 0 : i64, scratch_operands = 0 : i64, tpu.core_type = #tpu.core_type<tc>, window_params = [{transform_indices = @transform_0, window_bounds = array<i64: 1, 8, 16>}, {transform_indices = @transform_1, window_bounds = array<i64: 1, 8, 16>}, {transform_indices = @transform_2, window_bounds = array<i64: 1, 1, 16>}, {transform_indices = @transform_3, window_bounds = array<i64: 1, 16, 3>}]} {
    %c0 = arith.constant 0 : index
    %c0_0 = arith.constant 0 : index
    %c0_1 = arith.constant 0 : index
    %0 = vector.load %arg2[%c0, %c0_0, %c0_1] : memref<1x8x16xbf16, #tpu.memory_space<vmem>>, vector<1x8x16xbf16>
    %1 = vector.shape_cast %0 : vector<1x8x16xbf16> to vector<8x16xbf16>
    %c0_2 = arith.constant 0 : index
    %c0_3 = arith.constant 0 : index
    %c0_4 = arith.constant 0 : index
    %2 = vector.load %arg3[%c0_2, %c0_3, %c0_4] : memref<1x8x16xbf16, #tpu.memory_space<vmem>>, vector<1x8x16xbf16>
    %3 = vector.shape_cast %2 : vector<1x8x16xbf16> to vector<8x16xbf16>
    %cst = arith.constant dense<0.000000e+00> : vector<16x16xf32>
    %4 = tpu.matmul %1, %3, %cst {dimension_numbers = #tpu.dot_dimension_numbers<[0], [0], [1], [1], [0, 1, 1, 1], [], []>} : vector<8x16xbf16>, vector<8x16xbf16>, vector<16x16xf32> -> vector<16x16xf32>
    %cst_5 = arith.constant 2.000000e+00 : f32
    %5 = vector.broadcast %cst_5 : f32 to vector<16x16xf32>
    %6 = arith.mulf %5, %4 : vector<16x16xf32>
    %c0_6 = arith.constant 0 : index
    %c0_7 = arith.constant 0 : index
    %c0_8 = arith.constant 0 : index
    %7 = vector.load %arg4[%c0_6, %c0_7, %c0_8] : memref<1x1x16xf32, #tpu.memory_space<vmem>>, vector<1x1x16xf32>
    %8 = vector.shape_cast %7 : vector<1x1x16xf32> to vector<1x16xf32>
    %9 = vector.broadcast %8 : vector<1x16xf32> to vector<16x16xf32>
    %10 = arith.subf %6, %9 : vector<16x16xf32>
    %11 = tpu.iota {dimensions = array<i32: 1>} : vector<16x16xi32>
    %cst_9 = arith.constant dense<0xFF800000> : vector<16xf32>
    %12 = vector.multi_reduction <maximumf>, %10, %cst_9 [1] : vector<16x16xf32> to vector<16xf32>
    %13 = vector.shape_cast %12 : vector<16xf32> to vector<16x1xf32>
    %14 = vector.broadcast %13 : vector<16x1xf32> to vector<16x16xf32>
    %15 = arith.cmpf oeq, %10, %14 : vector<16x16xf32>
    %c16_i32 = arith.constant 16 : i32
    %16 = vector.broadcast %c16_i32 : i32 to vector<16x16xi32>
    %17 = arith.select %15, %11, %16 : vector<16x16xi1>, vector<16x16xi32>
    %cst_10 = arith.constant dense<2147483647> : vector<16xi32>
    %18 = vector.multi_reduction <minsi>, %17, %cst_10 [1] : vector<16x16xi32> to vector<16xi32>
    %19 = vector.shape_cast %18 : vector<16xi32> to vector<16x1xi32>
    %20 = vector.broadcast %19 : vector<16x1xi32> to vector<16x16xi32>
    %21 = arith.cmpi eq, %11, %20 : vector<16x16xi32>
    %cst_11 = arith.constant 0xFF800000 : f32
    %22 = vector.broadcast %cst_11 : f32 to vector<16x16xf32>
    %23 = arith.select %21, %22, %10 : vector<16x16xi1>, vector<16x16xf32>
    %cst_12 = arith.constant dense<0xFF800000> : vector<16xf32>
    %24 = vector.multi_reduction <maximumf>, %23, %cst_12 [1] : vector<16x16xf32> to vector<16xf32>
    %25 = vector.shape_cast %24 : vector<16xf32> to vector<16x1xf32>
    %26 = vector.broadcast %25 : vector<16x1xf32> to vector<16x16xf32>
    %27 = arith.cmpf oeq, %23, %26 : vector<16x16xf32>
    %c16_i32_13 = arith.constant 16 : i32
    %28 = vector.broadcast %c16_i32_13 : i32 to vector<16x16xi32>
    %29 = arith.select %27, %11, %28 : vector<16x16xi1>, vector<16x16xi32>
    %cst_14 = arith.constant dense<2147483647> : vector<16xi32>
    %30 = vector.multi_reduction <minsi>, %29, %cst_14 [1] : vector<16x16xi32> to vector<16xi32>
    %31 = vector.shape_cast %30 : vector<16xi32> to vector<16x1xi32>
    %32 = vector.broadcast %31 : vector<16x1xi32> to vector<16x16xi32>
    %33 = arith.cmpi eq, %11, %32 : vector<16x16xi32>
    %cst_15 = arith.constant 0xFF800000 : f32
    %34 = vector.broadcast %cst_15 : f32 to vector<16x16xf32>
    %35 = arith.select %33, %34, %23 : vector<16x16xi1>, vector<16x16xf32>
    %cst_16 = arith.constant dense<0xFF800000> : vector<16xf32>
    %36 = vector.multi_reduction <maximumf>, %35, %cst_16 [1] : vector<16x16xf32> to vector<16xf32>
    %37 = vector.shape_cast %36 : vector<16xf32> to vector<16x1xf32>
    %38 = vector.broadcast %37 : vector<16x1xf32> to vector<16x16xf32>
    %39 = arith.cmpf oeq, %35, %38 : vector<16x16xf32>
    %c16_i32_17 = arith.constant 16 : i32
    %40 = vector.broadcast %c16_i32_17 : i32 to vector<16x16xi32>
    %41 = arith.select %39, %11, %40 : vector<16x16xi1>, vector<16x16xi32>
    %cst_18 = arith.constant dense<2147483647> : vector<16xi32>
    %42 = vector.multi_reduction <minsi>, %41, %cst_18 [1] : vector<16x16xi32> to vector<16xi32>
    %43 = vector.shape_cast %42 : vector<16xi32> to vector<16x1xi32>
    %44 = tpu.concatenate %19, %31, %43 in 1 : vector<16x1xi32>, vector<16x1xi32>, vector<16x1xi32> -> vector<16x3xi32>
    %c0_19 = arith.constant 0 : index
    %c0_20 = arith.constant 0 : index
    %c0_21 = arith.constant 0 : index
    %45 = vector.load %arg5[%c0_19, %c0_20, %c0_21] : memref<1x16x3xi32, #tpu.memory_space<vmem>>, vector<1x16x3xi32>
    %46 = vector.shape_cast %45 : vector<1x16x3xi32> to vector<16x3xi32>
    %47 = vector.shape_cast %44 : vector<16x3xi32> to vector<1x16x3xi32>
    tpu.vector_store %arg5[%c0_19, %c0_20, %c0_21], %47 {strides = array<i32>} : memref<1x16x3xi32, #tpu.memory_space<vmem>>, vector<1x16x3xi32>,
    return
  }
  func.func @transform_0(%arg0: i32, %arg1: i32) -> (i32, i32, i32) {
    %c0_i32 = arith.constant 0 : i32
    %c0_i32_0 = arith.constant 0 : i32
    return %arg0, %c0_i32, %arg1 : i32, i32, i32
  }
  func.func @transform_1(%arg0: i32, %arg1: i32) -> (i32, i32, i32) {
    %c0_i32 = arith.constant 0 : i32
    %c0_i32_0 = arith.constant 0 : i32
    %c0_i32_1 = arith.constant 0 : i32
    return %arg0, %c0_i32, %c0_i32_0 : i32, i32, i32
  }
  func.func @transform_2(%arg0: i32, %arg1: i32) -> (i32, i32, i32) {
    %c0_i32 = arith.constant 0 : i32
    %c0_i32_0 = arith.constant 0 : i32
    %c0_i32_1 = arith.constant 0 : i32
    return %arg0, %c0_i32, %c0_i32_0 : i32, i32, i32
  }
  func.func @transform_3(%arg0: i32, %arg1: i32) -> (i32, i32, i32) {
    %c0_i32 = arith.constant 0 : i32
    %c0_i32_0 = arith.constant 0 : i32
    return %arg0, %arg1, %c0_i32 : i32, i32, i32
  }
}

</mosaic_0001>

<llo_original>
// kernel: tpu_custom_call.1
$region0: #{tpu_custom_call.1}
  #allocation0 [shape = 'u32[]', space=smem, size = 0x4, offset = 0x4, fixed_abs, tag = 'smem constant byte address 0x4 - core index']
  #allocation1 [shape = 'u32[72,128]{1,0:T(1,128)}', space=vmem, size = 0x9000, scoped, tag = 'internal scratch']
  %s0 = inlined_call_operand.hbm [shape: bf16[2,8,16], index: 0, kind: input, shape index: {}]
  %s1 = inlined_call_operand.hbm [shape: bf16[2,8,16], index: 1, kind: input, shape index: {}]
  %s2 = inlined_call_operand.hbm [shape: f32[2,1,16], index: 2, kind: input, shape index: {}]
  %s3 = inlined_call_operand.vmem [shape: s32[2,16,3], index: 3, kind: output, shape index: {}]
  %s4 = sld [smem:[#allocation0]]
  $region57: #{tpu_custom_call.1} parent=0
    _
  %s6 = ssub.s32 1, %s4
  %s7 = scalar_select 0, %s6, %s4
  $region1: #{tpu_custom_call.1} parent=0
    #allocation2 [shape = 'u8[4096]{0}', space=vmem, size = 0x1000, scoped, tag = 'input window, operand 0']
    #allocation3 [shape = 's32[2]{0}', space=sflag, size = 0x8, scoped, tag = 'scoped memory for tpu_custom_call.1']
    #allocation4 [shape = 'u8[4096]{0}', space=vmem, size = 0x1000, scoped, tag = 'input window, operand 1']
    #allocation5 [shape = 's32[2]{0}', space=sflag, size = 0x8, scoped, tag = 'scoped memory for tpu_custom_call.1']
    #allocation6 [shape = 'u8[1024]{0}', space=vmem, size = 0x400, scoped, tag = 'input window, operand 2']
    %8 = vsyncpa [#allocation3], 0
    %s9 = scalar_lea.sflag [#allocation3], 1
    %10 = vsyncpa %s9, 0
    %11 = vsyncpa [#allocation5], 0
    %s12 = scalar_lea.sflag [#allocation5], 1
    %13 = vsyncpa %s12, 0
    loop: start=0, step=1, limit=4
    $region2: #{tpu_custom_call.1} parent=1 // loop_pre_header
      _
    $region3: #{tpu_custom_call.1} parent=1 // loop_header
      %s15 = sphi 0, %s19
      %p16 = scmp.ge.s32.totalorder %s15, 4
      %s22 = sphi 0, %s34
      %s23 = sphi 0, %s30
      %s24 = sphi 0, %s22
      %s25 = sphi 0, %s23
      %s26 = sphi 0, %s24
      %s27 = sphi 0, %s25
      %s39 = sphi 0, %s41
      %s42 = sphi 0, %s39
      %s43 = sphi 0, %s42
      %s59 = sphi 0, %s43
      %s65 = sphi 0, %s67
      %s68 = sphi 0, %s65
      %s69 = sphi 0, %s68
      %s85 = sphi 0, %s69
      %s91 = sphi 0, %s93
      %s94 = sphi 0, %s91
      %s95 = sphi 0, %s94
      %s111 = sphi 0, %s95
      %s119 = sphi 0, %s121
      %s122 = sphi 0, %s119
      %s123 = sphi 0, %s122
      %s139 = sphi 0, %s123
    $region4: #{tpu_custom_call.1} parent=1 // loop_header_branch
      %18 = sbr.rel (%p16) target = $region8
    $region5: #{tpu_custom_call.1} parent=1 // loop_body
      %s20 = ssub.s32 %s15, 1
      %s21 = ssub.s32 %s15, 2
      %s28 = sadd.s32 1, %s23
      %p29 = scmp.ge.s32.totalorder %s28, 1
      %s30 = scalar_select %p29, 0, %s28
      %s31 = sadd.s32 1, %s22
      %s32 = scalar_select %p29, %s31, %s22
      %p33 = scmp.ge.s32.totalorder %s32, 2
      %s34 = scalar_select %p33, 0, %s32
      %s35 = ssub.s32 %s22, %s34
      %s36 = ssub.s32 %s23, %s30
      %s37 = sor.u32 %s35, %s36
      %p38 = scmp.eq.s32.totalorder %s37, 0
      %s40 = sadd.s32 %s39, 1
      %s41 = scalar_select %p38, %s39, %s40
      %p44 = pneg %p38
      %p45 = scmp.eq.s32.totalorder %s15, 1
      %p46 = por %p44, %p45
      %p47 = scmp.ne.s32.totalorder %s39, %s42
      %p48 = scmp.eq.s32.totalorder %s15, 0
      %p49 = por %p47, %p48
      %p50 = scmp.ne.s32.totalorder %s39, %s42
      %p51 = scmp.eq.s32.totalorder %s20, 1
      %p52 = por %p50, %p51
      %p53 = scmp.ne.s32.totalorder %s42, %s43
      %p54 = scmp.eq.s32.totalorder %s20, 0
      %p55 = por %p53, %p54
      %p56 = scmp.ne.s32.totalorder %s42, %s43
      %p57 = scmp.eq.s32.totalorder %s21, 1
      %p58 = por %p56, %p57
      %p60 = scmp.ne.s32.totalorder %s43, %s59
      %p61 = scmp.eq.s32.totalorder %s21, 0
      %p62 = por %p60, %p61
      %s63 = ssub.s32 %s22, %s34
      %p64 = scmp.eq.s32.totalorder %s63, 0
      %s66 = sadd.s32 %s65, 1
      %s67 = scalar_select %p64, %s65, %s66
      %p70 = pneg %p64
      %p71 = scmp.eq.s32.totalorder %s15, 1
      %p72 = por %p70, %p71
      %p73 = scmp.ne.s32.totalorder %s65, %s68
      %p74 = scmp.eq.s32.totalorder %s15, 0
      %p75 = por %p73, %p74
      %p76 = scmp.ne.s32.totalorder %s65, %s68
      %p77 = scmp.eq.s32.totalorder %s20, 1
      %p78 = por %p76, %p77
      %p79 = scmp.ne.s32.totalorder %s68, %s69
      %p80 = scmp.eq.s32.totalorder %s20, 0
      %p81 = por %p79, %p80
      %p82 = scmp.ne.s32.totalorder %s68, %s69
      %p83 = scmp.eq.s32.totalorder %s21, 1
      %p84 = por %p82, %p83
      %p86 = scmp.ne.s32.totalorder %s69, %s85
      %p87 = scmp.eq.s32.totalorder %s21, 0
      %p88 = por %p86, %p87
      %s89 = ssub.s32 %s22, %s34
      %p90 = scmp.eq.s32.totalorder %s89, 0
      %s92 = sadd.s32 %s91, 1
      %s93 = scalar_select %p90, %s91, %s92
      %p96 = pneg %p90
      %p97 = scmp.eq.s32.totalorder %s15, 1
      %p98 = por %p96, %p97
      %p99 = scmp.ne.s32.totalorder %s91, %s94
      %p100 = scmp.eq.s32.totalorder %s15, 0
      %p101 = por %p99, %p100
      %p102 = scmp.ne.s32.totalorder %s91, %s94
      %p103 = scmp.eq.s32.totalorder %s20, 1
      %p104 = por %p102, %p103
      %p105 = scmp.ne.s32.totalorder %s94, %s95
      %p106 = scmp.eq.s32.totalorder %s20, 0
      %p107 = por %p105, %p106
      %p108 = scmp.ne.s32.totalorder %s94, %s95
      %p109 = scmp.eq.s32.totalorder %s21, 1
      %p110 = por %p108, %p109
      %p112 = scmp.ne.s32.totalorder %s95, %s111
      %p113 = scmp.eq.s32.totalorder %s21, 0
      %p114 = por %p112, %p113
      %s115 = ssub.s32 %s22, %s34
      %s116 = ssub.s32 %s23, %s30
      %s117 = sor.u32 %s115, %s116
      %p118 = scmp.eq.s32.totalorder %s117, 0
      %s120 = sadd.s32 %s119, 1
      %s121 = scalar_select %p118, %s119, %s120
      %p124 = pneg %p118
      %p125 = scmp.eq.s32.totalorder %s15, 1
      %p126 = por %p124, %p125
      %p127 = scmp.ne.s32.totalorder %s119, %s122
      %p128 = scmp.eq.s32.totalorder %s15, 0
      %p129 = por %p127, %p128
      %p130 = scmp.ne.s32.totalorder %s119, %s122
      %p131 = scmp.eq.s32.totalorder %s20, 1
      %p132 = por %p130, %p131
      %p133 = scmp.ne.s32.totalorder %s122, %s123
      %p134 = scmp.eq.s32.totalorder %s20, 0
      %p135 = por %p133, %p134
      %p136 = scmp.ne.s32.totalorder %s122, %s123
      %p137 = scmp.eq.s32.totalorder %s21, 1
      %p138 = por %p136, %p137
      %p140 = scmp.ne.s32.totalorder %s123, %s139
      %p141 = scmp.eq.s32.totalorder %s21, 0
      %p142 = por %p140, %p141
      %p143 = scmp.le.s32.totalorder 1, %s15
      %p144 = scmp.lt.s32.totalorder %s15, 3
      %p145 = pnand %p143, %p144
      %p146 = pneg %p145
      // Predicated region
      $region9: #{tpu_custom_call.1} parent=5 // pred_check
        _
      $region10: #{tpu_custom_call.1} parent=5 // pred_check_branch
        %148 = sbr.rel (%p145) target = $region12
      $region11: #{tpu_custom_call.1} parent=5 // pred_region
        %s149 = ssub.s32 %s15, 1
      $region12: #{tpu_custom_call.1} parent=5 // pred_fallthru
        _
      %p150 = scmp.lt.s32.totalorder %s15, 2
      // Predicated region
      $region13: #{tpu_custom_call.1} parent=5 // pred_check
        %p151 = pneg %p150
      $region14: #{tpu_custom_call.1} parent=5 // pred_check_branch
        %153 = sbr.rel (%p151) target = $region16
      $region15: #{tpu_custom_call.1} parent=5 // pred_region
        // Predicated region
        $region17: #{tpu_custom_call.1} parent=15 // pred_check
          %p154 = pneg %p49
        $region18: #{tpu_custom_call.1} parent=15 // pred_check_branch
          %156 = sbr.rel (%p154) target = $region20
        $region19: #{tpu_custom_call.1} parent=15 // pred_region
          %s157 = sand.u32 %s39, 1
          %s158 = scalar_lea.sflag [#allocation3], %s157
          %s159 = sand.u32 %s39, 1
          %s160 = smul.addr %s159, 4
          %s161 = scalar_lea.vmem [#allocation2], %s160
          %163 = vsyncadd %s158, 0
          %s164 = sadd.s32 %s23, %s22
          %s165 = smul.addr %s164, 4
          %s166 = scalar_lea.hbm %s0, %s165
          %s168 = sshll.u32 %s166, 4
          %s169 = int_to_ptr.hbm [resolvable:$true] %s168
          %s170 = sshll.u32 %s161, 4
          %s171 = int_to_ptr.vmem [resolvable:$true] %s170
          %173 = dma.hbm_to_vmem [thread:$0]  %s169, 64, %s171, %s158
        $region20: #{tpu_custom_call.1} parent=15 // pred_fallthru
          _
        // Predicated region
        $region21: #{tpu_custom_call.1} parent=15 // pred_check
          %p174 = pneg %p75
        $region22: #{tpu_custom_call.1} parent=15 // pred_check_branch
          %176 = sbr.rel (%p174) target = $region24
        $region23: #{tpu_custom_call.1} parent=15 // pred_region
          %s177 = sand.u32 %s15, 1
          %s178 = scalar_lea.sflag [#allocation5], %s177
          %s179 = sand.u32 %s65, 1
          %s180 = smul.addr %s179, 4
          %s181 = scalar_lea.vmem [#allocation4], %s180
          %183 = vsyncadd %s178, 0
          %s184 = smul.addr %s22, 4
          %s185 = scalar_lea.hbm %s1, %s184
          %s187 = sshll.u32 %s185, 4
          %s188 = int_to_ptr.hbm [resolvable:$true] %s187
          %s189 = sshll.u32 %s181, 4
          %s190 = int_to_ptr.vmem [resolvable:$true] %s189
          %192 = dma.hbm_to_vmem [thread:$0]  %s188, 64, %s190, %s178
        $region24: #{tpu_custom_call.1} parent=15 // pred_fallthru
          _
        // Predicated region
        $region25: #{tpu_custom_call.1} parent=15 // pred_check
          %p193 = pneg %p101
        $region26: #{tpu_custom_call.1} parent=15 // pred_check_branch
          %195 = sbr.rel (%p193) target = $region28
        $region27: #{tpu_custom_call.1} parent=15 // pred_region
          %s196 = sand.u32 %s15, 1
          %s197 = scalar_lea.sflag [#allocation5], %s196
          %s198 = sand.u32 %s91, 1
          %s199 = scalar_lea.vmem [#allocation6], %s198
          %201 = vsyncadd %s197, 0
          %s202 = scalar_lea.hbm %s2, %s22
          %s204 = sshll.u32 %s202, 4
          %s205 = int_to_ptr.hbm [resolvable:$true] %s204
          %s206 = sshll.u32 %s199, 4
          %s207 = int_to_ptr.vmem [resolvable:$true] %s206
          %209 = dma.hbm_to_vmem [thread:$0]  %s205, 16, %s207, %s197
        $region28: #{tpu_custom_call.1} parent=15 // pred_fallthru
          _
      $region16: #{tpu_custom_call.1} parent=5 // pred_fallthru
        _
      %p210 = scmp.le.s32.totalorder 1, %s15
      %p211 = scmp.lt.s32.totalorder %s15, 3
      %p212 = pnand %p210, %p211
      %p213 = pneg %p212
      // Predicated region
      $region29: #{tpu_custom_call.1} parent=5 // pred_check
        _
      $region30: #{tpu_custom_call.1} parent=5 // pred_check_branch
        %215 = sbr.rel (%p212) target = $region32
      $region31: #{tpu_custom_call.1} parent=5 // pred_region
        %s216 = ssub.s32 %s15, 1
        %s217 = sand.u32 %s42, 1
        %s218 = scalar_lea.sflag [#allocation3], %s217
        %s219 = sand.u32 %s42, 1
        %s220 = smul.addr %s219, 4
        %s221 = scalar_lea.vmem [#allocation2], %s220
        // Predicated region
        $region33: #{tpu_custom_call.1} parent=31 // pred_check
          %p222 = pneg %p55
        $region34: #{tpu_custom_call.1} parent=31 // pred_check_branch
          %224 = sbr.rel (%p222) target = $region36
        $region35: #{tpu_custom_call.1} parent=31 // pred_region
          %226 = dma.done %s218, 64
        $region36: #{tpu_custom_call.1} parent=31 // pred_fallthru
          _
        %s227 = sand.u32 %s20, 1
        %s228 = scalar_lea.sflag [#allocation5], %s227
        %s229 = sand.u32 %s68, 1
        %s230 = smul.addr %s229, 4
        %s231 = scalar_lea.vmem [#allocation4], %s230
        // Predicated region
        $region37: #{tpu_custom_call.1} parent=31 // pred_check
          %p232 = pneg %p81
        $region38: #{tpu_custom_call.1} parent=31 // pred_check_branch
          %234 = sbr.rel (%p232) target = $region40
        $region39: #{tpu_custom_call.1} parent=31 // pred_region
          %236 = dma.done %s228, 64
        $region40: #{tpu_custom_call.1} parent=31 // pred_fallthru
          _
        %s237 = sand.u32 %s20, 1
        %s238 = scalar_lea.sflag [#allocation5], %s237
        %s239 = sand.u32 %s94, 1
        %s240 = scalar_lea.vmem [#allocation6], %s239
        // Predicated region
        $region41: #{tpu_custom_call.1} parent=31 // pred_check
          %p241 = pneg %p107
        $region42: #{tpu_custom_call.1} parent=31 // pred_check_branch
          %243 = sbr.rel (%p241) target = $region44
        $region43: #{tpu_custom_call.1} parent=31 // pred_region
          %245 = dma.done %s238, 16
        $region44: #{tpu_custom_call.1} parent=31 // pred_fallthru
          _
        %s246 = sand.u32 %s42, 1
        %s247 = scalar_lea.sflag [#allocation3], %s246
        %s248 = sand.u32 %s42, 1
        %s249 = smul.addr %s248, 4
        %s250 = scalar_lea.vmem [#allocation2], %s249
        %p251 = pneg %p55
        %p252 = pneg %p52
        %s253 = sand.u32 %s20, 1
        %s254 = scalar_lea.sflag [#allocation5], %s253
        %s255 = sand.u32 %s68, 1
        %s256 = smul.addr %s255, 4
        %s257 = scalar_lea.vmem [#allocation4], %s256
        %p258 = pneg %p81
        %p259 = pneg %p78
        %s260 = sand.u32 %s20, 1
        %s261 = scalar_lea.sflag [#allocation5], %s260
        %s262 = sand.u32 %s94, 1
        %s263 = scalar_lea.vmem [#allocation6], %s262
        %p264 = pneg %p107
        %p265 = pneg %p104
        %p266 = pneg %p135
        %p267 = pneg %p132
        %s268 = smul.u32 2, %s25
        %p269 = scmp.lt.s32.totalorder %s24, 1
        %s270 = scalar_select %p269, %s24, 1
        %p271 = scmp.lt.s32.totalorder %s268, 1
        %s272 = scalar_select %p271, %s268, 1
        %s273 = smul.addr %s270, 2
        %s274 = sadd.s32 %s272, %s273
        %s275 = smul.addr %s274, 8
        %s276 = scalar_lea.vmem %s3, %s275
        %s277 = smul.u32 2, %s25
        %p278 = scmp.lt.s32.totalorder %s24, 1
        %s279 = scalar_select %p278, %s24, 1
        %p280 = scmp.lt.s32.totalorder %s277, 1
        %s281 = scalar_select %p280, %s277, 1
        %s282 = smul.addr %s279, 2
        %s283 = sadd.s32 %s281, %s282
        %s284 = smul.addr %s283, 8
        %s285 = scalar_lea.vmem %s3, %s284
        %s286 = smul.u32 2, %s25
        %v288 = vld [vmem:[%s221] sm:$0xf]
        %v289 = vld [vmem:[%s231] sm:$0xf]
        %290 = vxpose.xlu0.c.b16.start [1/8] %v288, 128
        %291 = vxpose.xlu0.c.b16.cont [2/8] 0, 128
        %292 = vxpose.xlu0.c.b16.cont [3/8] 0, 128
        %293 = vxpose.xlu0.c.b16.cont [4/8] 0, 128
        %294 = vxpose.xlu0.c.b16.cont [5/8] 0, 128
        %295 = vxpose.xlu0.c.b16.cont [6/8] 0, 128
        %296 = vxpose.xlu0.c.b16.cont [7/8] 0, 128
        %297 = vxpose.xlu0.c.b16.end [8/8] 0, 128
        %v298 = vpop.trf.xlu0
        %v299 = vpop.trf.xlu0
        %v300 = vpop.trf.xlu0
        %v301 = vpop.trf.xlu0
        %v302 = vpop.trf.xlu0
        %v303 = vpop.trf.xlu0
        %v304 = vpop.trf.xlu0
        %v305 = vpop.trf.xlu0
        %vm306 = vcmask 64512
        %v308 = vsel %vm306, %v298, 0
        %vm310 = vcmask 1043456
        %v312 = vsel %vm310, %v289, 0
        %314 = vmatpush.bf16.msra.mxu0 0
        %315 = vmatpush.bf16.msra.mxu0 0
        %316 = vmatpush.bf16.msra.mxu0 0
        %317 = vmatpush.bf16.msra.mxu0 0
        %318 = vmatpush.bf16.msra.mxu0 0
        %319 = vmatpush.bf16.msra.mxu0 0
        %320 = vmatpush.bf16.msra.mxu0 0
        %321 = vmatpush.bf16.msra.mxu0 %v312
        %322 = vmatmul.bf16.gmra.mxu0 %v308
        %v323 = vpop.f32.mrf.mxu0
        %v324 = vadd.f32 0.0, %v323
        %v325 = vpop.f32.mrf.mxu0
        %v326 = vadd.f32 0.0, %v325
        %327 = vdwg.mxu0
        %v328 = vmul.f32 %v324, 2.0
        %v329 = vmul.f32 %v326, 2.0
        %v330 = vld [vmem:[%s240] sm:$0x1]
        %v332 = vperm.slane %v330, 0
        %v334 = vsub.f32 %v328, %v332
        %v335 = vsub.f32 %v329, %v332
        %v336 = vlaneseq
        %v337 = vand.u32 %v336, 127
        %vm338 = vcmask 130048
        %v339 = vsel %vm338, %v334, -inf
        %340 = vmax.xlane.f32.xlu0 %v339
        %v341 = vpop.xlane.xlu0 %340
        %v342 = vsel %vm338, %v335, -inf
        %343 = vmax.xlane.f32.xlu0 %v342
        %v344 = vpop.xlane.xlu0 %343
        %vm345 = vcmp.eq.f32.partialorder %v334, %v341
        %vm346 = vcmp.eq.f32.partialorder %v335, %v344
        %v347 = vsel %vm345, %v337, 16
        %v348 = vsel %vm346, %v337, 16
        %v349 = vsel %vm338, %v347, 2147483647
        %v350 = vand.u32 %v349, 65535
        %v351 = vshra.s32 %v349, 16
        %v352 = vcvt.s32.f32 %v350
        %v353 = vcvt.s32.f32 %v351
        %354 = vmin.xlane.f32.xlu0 %v353
        %v355 = vpop.xlane.xlu0 %354
        %vm356 = vcmp.eq.f32.partialorder %v353, %v355
        %v357 = vsel %vm356, %v352, inf
        %358 = vmin.xlane.f32.xlu0 %v357
        %v359 = vpop.xlane.xlu0 %358
        %v360 = vcvt.f32.s32 %v359
        %v361 = vcvt.f32.s32 %v355
        %v362 = vshll.u32 %v361, 16
        %v363 = vadd.s32 %v362, %v360
        %v364 = vsel %vm338, %v348, 2147483647
        %v365 = vand.u32 %v364, 65535
        %v366 = vshra.s32 %v364, 16
        %v367 = vcvt.s32.f32 %v365
        %v368 = vcvt.s32.f32 %v366
        %369 = vmin.xlane.f32.xlu0 %v368
        %v370 = vpop.xlane.xlu0 %369
        %vm371 = vcmp.eq.f32.partialorder %v368, %v370
        %v372 = vsel %vm371, %v367, inf
        %373 = vmin.xlane.f32.xlu0 %v372
        %v374 = vpop.xlane.xlu0 %373
        %v375 = vcvt.f32.s32 %v374
        %v376 = vcvt.f32.s32 %v370
        %v377 = vshll.u32 %v376, 16
        %v378 = vadd.s32 %v377, %v375
        %vm379 = vcmp.eq.s32.totalorder %v337, %v363
        %vm380 = vcmp.eq.s32.totalorder %v337, %v378
        %v381 = vsel %vm379, -inf, %v334
        %v382 = vsel %vm380, -inf, %v335
        %v383 = vsel %vm338, %v381, -inf
        %384 = vmax.xlane.f32.xlu0 %v383
        %v385 = vpop.xlane.xlu0 %384
        %v386 = vsel %vm338, %v382, -inf
        %387 = vmax.xlane.f32.xlu0 %v386
        %v388 = vpop.xlane.xlu0 %387
        %vm389 = vcmp.eq.f32.partialorder %v381, %v385
        %vm390 = vcmp.eq.f32.partialorder %v382, %v388
        %v391 = vsel %vm389, %v337, 16
        %v392 = vsel %vm390, %v337, 16
        %v393 = vsel %vm338, %v391, 2147483647
        %v394 = vand.u32 %v393, 65535
        %v395 = vshra.s32 %v393, 16
        %v396 = vcvt.s32.f32 %v394
        %v397 = vcvt.s32.f32 %v395
        %398 = vmin.xlane.f32.xlu0 %v397
        %v399 = vpop.xlane.xlu0 %398
        %vm400 = vcmp.eq.f32.partialorder %v397, %v399
        %v401 = vsel %vm400, %v396, inf
        %402 = vmin.xlane.f32.xlu0 %v401
        %v403 = vpop.xlane.xlu0 %402
        %v404 = vcvt.f32.s32 %v403
        %v405 = vcvt.f32.s32 %v399
        %v406 = vshll.u32 %v405, 16
        %v407 = vadd.s32 %v406, %v404
        %v408 = vsel %vm338, %v392, 2147483647
        %v409 = vand.u32 %v408, 65535
        %v410 = vshra.s32 %v408, 16
        %v411 = vcvt.s32.f32 %v409
        %v412 = vcvt.s32.f32 %v410
        %413 = vmin.xlane.f32.xlu0 %v412
        %v414 = vpop.xlane.xlu0 %413
        %vm415 = vcmp.eq.f32.partialorder %v412, %v414
        %v416 = vsel %vm415, %v411, inf
        %417 = vmin.xlane.f32.xlu0 %v416
        %v418 = vpop.xlane.xlu0 %417
        %v419 = vcvt.f32.s32 %v418
        %v420 = vcvt.f32.s32 %v414
        %v421 = vshll.u32 %v420, 16
        %v422 = vadd.s32 %v421, %v419
        %vm423 = vcmp.eq.s32.totalorder %v337, %v407
        %vm424 = vcmp.eq.s32.totalorder %v337, %v422
        %v425 = vsel %vm423, -inf, %v381
        %v426 = vsel %vm424, -inf, %v382
        %v427 = vsel %vm338, %v425, -inf
        %428 = vmax.xlane.f32.xlu0 %v427
        %v429 = vpop.xlane.xlu0 %428
        %v430 = vsel %vm338, %v426, -inf
        %431 = vmax.xlane.f32.xlu0 %v430
        %v432 = vpop.xlane.xlu0 %431
        %vm433 = vcmp.eq.f32.partialorder %v425, %v429
        %vm434 = vcmp.eq.f32.partialorder %v426, %v432
        %v435 = vsel %vm433, %v337, 16
        %v436 = vsel %vm434, %v337, 16
        %v437 = vsel %vm338, %v435, 2147483647
        %v438 = vand.u32 %v437, 65535
        %v439 = vshra.s32 %v437, 16
        %v440 = vcvt.s32.f32 %v438
        %v441 = vcvt.s32.f32 %v439
        %442 = vmin.xlane.f32.xlu0 %v441
        %v443 = vpop.xlane.xlu0 %442
        %vm444 = vcmp.eq.f32.partialorder %v441, %v443
        %v445 = vsel %vm444, %v440, inf
        %446 = vmin.xlane.f32.xlu0 %v445
        %v447 = vpop.xlane.xlu0 %446
        %v448 = vcvt.f32.s32 %v447
        %v449 = vcvt.f32.s32 %v443
        %v450 = vshll.u32 %v449, 16
        %v451 = vadd.s32 %v450, %v448
        %v452 = vsel %vm338, %v436, 2147483647
        %v453 = vand.u32 %v452, 65535
        %v454 = vshra.s32 %v452, 16
        %v455 = vcvt.s32.f32 %v453
        %v456 = vcvt.s32.f32 %v454
        %457 = vmin.xlane.f32.xlu0 %v456
        %v458 = vpop.xlane.xlu0 %457
        %vm459 = vcmp.eq.f32.partialorder %v456, %v458
        %v460 = vsel %vm459, %v455, inf
        %461 = vmin.xlane.f32.xlu0 %v460
        %v462 = vpop.xlane.xlu0 %461
        %v463 = vcvt.f32.s32 %v462
        %v464 = vcvt.f32.s32 %v458
        %v465 = vshll.u32 %v464, 16
        %v466 = vadd.s32 %v465, %v463
        %vm467 = vcmask 7168
        %v468 = vsel %vm467, %v363, %v407
        %v469 = vsel %vm467, %v378, %v422
        %vm470 = vcmask 15360
        %v471 = vsel %vm470, %v468, %v451
        %v472 = vsel %vm470, %v469, %v466
        %vm473 = vcmask 23552
        %474 = vst.msk [vmem:[%s285] sm:$0xff] %vm473, %v471
        %475 = vst.msk [vmem:[%s285 + $0x8] sm:$0xff] %vm473, %v472
        %s476 = smul.u32 2, %s25
        %p477 = scmp.lt.s32.totalorder %s24, 1
        %s478 = scalar_select %p477, %s24, 1
        %p479 = scmp.lt.s32.totalorder %s476, 1
        %s480 = scalar_select %p479, %s476, 1
        %s481 = smul.addr %s478, 2
        %s482 = sadd.s32 %s480, %s481
        %s483 = smul.addr %s482, 8
        %s484 = scalar_lea.vmem %s3, %s483
        // Predicated region
        $region45: #{tpu_custom_call.1} parent=31 // pred_check
          %p485 = pneg %p132
        $region46: #{tpu_custom_call.1} parent=31 // pred_check_branch
          %487 = sbr.rel (%p485) target = $region48
        $region47: #{tpu_custom_call.1} parent=31 // pred_region
          %s488 = smul.u32 2, %s25
        $region48: #{tpu_custom_call.1} parent=31 // pred_fallthru
          _
      $region32: #{tpu_custom_call.1} parent=5 // pred_fallthru
        _
      %p489 = scmp.le.s32.totalorder 2, %s15
      // Predicated region
      $region49: #{tpu_custom_call.1} parent=5 // pred_check
        %p490 = pneg %p489
      $region50: #{tpu_custom_call.1} parent=5 // pred_check_branch
        %492 = sbr.rel (%p490) target = $region52
      $region51: #{tpu_custom_call.1} parent=5 // pred_region
        %s493 = ssub.s32 %s15, 2
        // Predicated region
        $region53: #{tpu_custom_call.1} parent=51 // pred_check
          %p494 = pneg %p138
        $region54: #{tpu_custom_call.1} parent=51 // pred_check_branch
          %496 = sbr.rel (%p494) target = $region56
        $region55: #{tpu_custom_call.1} parent=51 // pred_region
          %s497 = smul.u32 2, %s27
          %p498 = scmp.lt.s32.totalorder %s26, 1
          %s499 = scalar_select %p498, %s26, 1
          %p500 = scmp.lt.s32.totalorder %s497, 1
          %s501 = scalar_select %p500, %s497, 1
          %s502 = smul.addr %s499, 2
          %s503 = sadd.s32 %s501, %s502
          %s504 = smul.addr %s503, 8
          %s505 = scalar_lea.vmem %s3, %s504
        $region56: #{tpu_custom_call.1} parent=51 // pred_fallthru
          _
      $region52: #{tpu_custom_call.1} parent=5 // pred_fallthru
        _
    $region6: #{tpu_custom_call.1} parent=1 // loop_footer
      %s19 = sadd.s32 1, %s15
    $region7: #{tpu_custom_call.1} parent=1 // loop_footer_branch
      %14 = sbr.rel target = $region3
    $region8: #{tpu_custom_call.1} parent=1 // loop_exit
      _
    %506 = vsyncpa [#allocation3], 1
    %s507 = scalar_lea.sflag [#allocation3], 1
    %508 = vsyncpa %s507, 1
    %509 = vsyncpa [#allocation5], 1
    %s510 = scalar_lea.sflag [#allocation5], 1
    %511 = vsyncpa %s510, 1

</llo_original>
